<compile_context>
chip_gen: v5e
topology: v5e:2x2
jax: 0.10.0
libtpu: 0.0.40
codegen_flags: <defaults>
</compile_context>

<pallas_src>
import functools
import math

import jax
import jax.numpy as jnp
from jax import lax
from jax.experimental import pallas as pl
from jax.experimental.pallas import tpu as pltpu

_MODES = ("None", "AVG", "PN", "PN-SI", "PN-SCS")
_LANES = 128
_MAX_PACK_LANES = 512   # cap for lcm lane packing (bounds block-diag matmul)
_EPS = 1e-6


# -----------------------------------------------------------------------------
# Device-aware sizing
# -----------------------------------------------------------------------------
@functools.lru_cache(maxsize=None)
def _chip_params():
    try:
        kind = jax.devices()[0].device_kind.lower()
    except Exception:  # pragma: no cover - be robust to exotic runtimes
        kind = ""
    if "v7" in kind:
        # 64 MiB physical VMEM, 2 TensorCores per chip.
        return dict(tile_bytes=6 << 20, stream_vmem=40 << 20,
                    resident_limit=36 << 20, resident_vmem=44 << 20, cores=2)
    if ("v5 lite" in kind) or ("v5e" in kind) or ("v5lite" in kind):
        # 128 MiB physical VMEM but small (16 MiB) default scoped VMEM.
        return dict(tile_bytes=3 << 20, stream_vmem=26 << 20,
                    resident_limit=56 << 20, resident_vmem=72 << 20, cores=1)
    # v6e / v5p / v4 / default: 128 MiB physical VMEM.
    return dict(tile_bytes=6 << 20, stream_vmem=40 << 20,
                resident_limit=64 << 20, resident_vmem=80 << 20, cores=1)


def _sublane_multiple(itemsize: int) -> int:
    return {4: 8, 2: 16, 1: 32}.get(itemsize, 8)


def _resolve_row_tile(n_rows, n_cols, itemsize, tile_bytes, block_rows=None):
    """Row tile that fits the byte budget and is a legal TPU block shape
    (second-to-last dim a multiple of the sublane quantum, or full extent)."""
    sub = _sublane_multiple(itemsize)
    if block_rows is None:
        tr = (tile_bytes // max(1, n_cols * itemsize)) // sub * sub
        tr = max(sub, tr)
    else:
        tr = max(1, int(block_rows))
    tr = min(tr, n_rows)
    if tr < n_rows:
        tr = max(sub, (tr // sub) * sub)
    return tr


def _pack_lanes(n, d):
    """Lane-dense packed width L = lcm(D, 128), or None if packing is off."""
    if d % _LANES == 0:
        return None
    l = d * _LANES // math.gcd(d, _LANES)
    if l == d or l > _MAX_PACK_LANES or (n * d) % l != 0:
        return None
    return l


# -----------------------------------------------------------------------------
# Fused single-pass resident kernel (whole x lives in VMEM)
# -----------------------------------------------------------------------------
def _resident_kernel(x_ref, o_ref, *, mode, scale, n_rows):
    x = x_ref[...].astype(jnp.float32)
    mu = jnp.sum(x, axis=0, keepdims=True) * (1.0 / n_rows)     # (1, D)
    if mode == "AVG":
        y = x - mu
    elif mode == "PN":
        xc = x - mu
        mean_sq = jnp.sum(xc * xc) * (1.0 / n_rows)              # centered
        y = xc * (scale * lax.rsqrt(mean_sq + _EPS))
    elif mode == "PN-SI":
        xc = x - mu
        inv = scale * lax.rsqrt(jnp.sum(xc * xc, axis=1, keepdims=True) + _EPS)
        y = xc * inv
    else:  # "PN-SCS"
        inv = scale * lax.rsqrt(jnp.sum(x * x, axis=1, keepdims=True) + _EPS)
        y = x * inv - mu
    o_ref[...] = y.astype(o_ref.dtype)


def _pairnorm_resident(x, mode, scale, *, vmem_limit):
    n, d = x.shape
    kernel = functools.partial(_resident_kernel, mode=mode, scale=scale,
                               n_rows=n)
    return pl.pallas_call(
        kernel,
        out_shape=jax.ShapeDtypeStruct((n, d), x.dtype),
        grid=(1,),
        in_specs=[pl.BlockSpec((n, d), lambda i: (0, 0))],
        out_specs=pl.BlockSpec((n, d), lambda i: (0, 0)),
        compiler_params=pltpu.CompilerParams(
            dimension_semantics=("arbitrary",),
            vmem_limit_bytes=vmem_limit),
    )(x)


# -----------------------------------------------------------------------------
# Pass 1 (streaming): per-lane column sums + per-lane sums of squares
# -----------------------------------------------------------------------------
def _stats_kernel(x_ref, colsum_ref, sumsq_ref, *, n_rows, tile_rows,
                  tiles_per_core, n_full_tiles, needs_mask):
    c = pl.program_id(0)
    i = pl.program_id(1)

    @pl.when(i == 0)
    def _init():
        colsum_ref[...] = jnp.zeros_like(colsum_ref)
        sumsq_ref[...] = jnp.zeros_like(sumsq_ref)

    x = x_ref[...].astype(jnp.float32)
    g = c * tiles_per_core + i                      # global row-tile index

    def _accum(xv):
        colsum_ref[0:1, :] += jnp.sum(xv, axis=0, keepdims=True)
        sumsq_ref[0:1, :] += jnp.sum(xv * xv, axis=0, keepdims=True)

    if not needs_mask:
        _accum(x)
    else:
        @pl.when(g < n_full_tiles)            # fully in-bounds: no masking
        def _():
            _accum(x)

        @pl.when(g >= n_full_tiles)           # partial or fully padded tile
        def _():
            rows = lax.broadcasted_iota(jnp.int32, x.shape, 0) + g * tile_rows
            _accum(jnp.where(rows < n_rows, x, 0.0))


def _stats(x2d, *, tile_bytes, vmem_limit, num_cores, block_rows=None):
    m, l = x2d.shape
    tr = _resolve_row_tile(m, l, x2d.dtype.itemsize, tile_bytes, block_rows)
    n_tiles = pl.cdiv(m, tr)
    cores = max(1, min(int(num_cores), n_tiles))
    tpc = pl.cdiv(n_tiles, cores)
    total_tiles = cores * tpc
    needs_mask = (m % tr != 0) or (total_tiles != n_tiles)

    if total_tiles == n_tiles:
        x_map = lambda c, i: (c * tpc + i, 0)
    else:
        # Padded grid: clamp the block index so the DMA stays in-bounds; the
        # kernel masks the padded tiles' contribution to zero.
        x_map = lambda c, i: (jnp.minimum(c * tpc + i, n_tiles - 1), 0)

    kernel = functools.partial(
        _stats_kernel, n_rows=m, tile_rows=tr, tiles_per_core=tpc,
        n_full_tiles=m // tr, needs_mask=needs_mask)

    colsum, sumsq = pl.pallas_call(
        kernel,
        out_shape=(jax.ShapeDtypeStruct((cores * 8, l), jnp.float32),
                   jax.ShapeDtypeStruct((cores * 8, l), jnp.float32)),
        grid=(cores, tpc),
        in_specs=[pl.BlockSpec((tr, l), x_map)],
        out_specs=(pl.BlockSpec((8, l), lambda c, i: (c, 0)),
                   pl.BlockSpec((8, l), lambda c, i: (c, 0))),
        compiler_params=pltpu.CompilerParams(
            dimension_semantics=("parallel", "arbitrary"),
            vmem_limit_bytes=vmem_limit),
    )(x2d)
    # Fold the per-core partial accumulators (tiny, f32).
    return colsum.sum(axis=0), sumsq.sum()


# -----------------------------------------------------------------------------
# Pass 2a (streaming): affine elementwise   out = x * mul - sub   (AVG / PN)
# -----------------------------------------------------------------------------
def _affine_kernel(mul_ref, sub_ref, x_ref, o_ref):
    x = x_ref[...].astype(jnp.float32)
    o_ref[...] = (x * mul_ref[...] - sub_ref[...]).astype(o_ref.dtype)


def _apply_affine(x2d, mul_row, sub_row, *, tile_bytes, vmem_limit,
                  block_rows=None):
    m, l = x2d.shape
    tr = _resolve_row_tile(m, l, x2d.dtype.itemsize, tile_bytes, block_rows)
    return pl.pallas_call(
        _affine_kernel,
        out_shape=jax.ShapeDtypeStruct((m, l), x2d.dtype),
        grid=(pl.cdiv(m, tr),),
        in_specs=[pl.BlockSpec((1, l), lambda i: (0, 0)),
                  pl.BlockSpec((1, l), lambda i: (0, 0)),
                  pl.BlockSpec((tr, l), lambda i: (i, 0))],
        out_specs=pl.BlockSpec((tr, l), lambda i: (i, 0)),
        compiler_params=pltpu.CompilerParams(
            dimension_semantics=("parallel",),
            vmem_limit_bytes=vmem_limit),
    )(mul_row, sub_row, x2d)


# -----------------------------------------------------------------------------
# Pass 2b (streaming): per-row-norm ('PN-SI', 'PN-SCS')
# -----------------------------------------------------------------------------
def _rownorm_packed_kernel(mu_ref, bd_ref, x_ref, o_ref, *, mode, scale):
    # Lane-packed view: each packed row holds K = L/D original rows.  Segment
    # (per-original-row) sums of squares via a block-diagonal ones matrix on
    # the otherwise idle MXU: (x2 @ B)[r, j] = sum over lanes in j's segment.
    x = x_ref[...].astype(jnp.float32)
    mu = mu_ref[...]
    if mode == "PN-SI":
        xc = x - mu
        seg = jnp.dot(xc * xc, bd_ref[...], preferred_element_type=jnp.float32)
        o_ref[...] = (xc * (scale * lax.rsqrt(seg + _EPS))).astype(o_ref.dtype)
    else:  # "PN-SCS"
        seg = jnp.dot(x * x, bd_ref[...], preferred_element_type=jnp.float32)
        o_ref[...] = (x * (scale * lax.rsqrt(seg + _EPS)) - mu).astype(o_ref.dtype)


def _rownorm_kernel(mu_ref, x_ref, o_ref, *, mode, scale):
    x = x_ref[...].astype(jnp.float32)
    mu = mu_ref[...]
    if mode == "PN-SI":
        xc = x - mu
        inv = scale * lax.rsqrt(jnp.sum(xc * xc, axis=1, keepdims=True) + _EPS)
        o_ref[...] = (xc * inv).astype(o_ref.dtype)
    else:  # "PN-SCS"
        inv = scale * lax.rsqrt(jnp.sum(x * x, axis=1, keepdims=True) + _EPS)
        o_ref[...] = (x * inv - mu).astype(o_ref.dtype)


def _apply_rownorm(x2d, mu_row, *, mode, scale, tile_bytes, vmem_limit,
                   block_diag=None, block_rows=None):
    m, l = x2d.shape
    tr = _resolve_row_tile(m, l, x2d.dtype.itemsize, tile_bytes, block_rows)
    if block_diag is not None:
        kernel = functools.partial(_rownorm_packed_kernel, mode=mode,
                                   scale=scale)
        in_specs = [pl.BlockSpec((1, l), lambda i: (0, 0)),
                    pl.BlockSpec((l, l), lambda i: (0, 0)),
                    pl.BlockSpec((tr, l), lambda i: (i, 0))]
        args = (mu_row, block_diag, x2d)
    else:
        kernel = functools.partial(_rownorm_kernel, mode=mode, scale=scale)
        in_specs = [pl.BlockSpec((1, l), lambda i: (0, 0)),
                    pl.BlockSpec((tr, l), lambda i: (i, 0))]
        args = (mu_row, x2d)
    return pl.pallas_call(
        kernel,
        out_shape=jax.ShapeDtypeStruct((m, l), x2d.dtype),
        grid=(pl.cdiv(m, tr),),
        in_specs=in_specs,
        out_specs=pl.BlockSpec((tr, l), lambda i: (i, 0)),
        compiler_params=pltpu.CompilerParams(
            dimension_semantics=("parallel",),
            vmem_limit_bytes=vmem_limit),
    )(*args)


# -----------------------------------------------------------------------------
# Public wrapper
# -----------------------------------------------------------------------------
def pairnorm(x: jax.Array, mode: str = "PN", scale: float = 1.0, *,
             block_rows=None, stats_cores=None, use_resident=None) -> jax.Array:
    """Pallas-TPU PairNorm forward.  x: (N, D) = (num_nodes, num_features).

    block_rows / stats_cores / use_resident are test/tuning overrides; the
    defaults auto-dispatch between the fused resident path and the two-pass
    streaming path based on the device's VMEM capacity.
    """
    assert mode in _MODES, mode
    if mode == "None":
        return x          # no-op: avoid an HBM round trip entirely

    n, d = x.shape
    scale = float(scale)
    params = _chip_params()

    # ---- fused single-pass resident path (1 HBM read + 1 write) -------------
    # Conservative working-set estimate: double-buffered in + out blocks plus
    # ~3 f32-sized temporaries inside the kernel.
    est = 4 * n * d * x.dtype.itemsize + 3 * n * d * 4
    resident = (est <= params["resident_limit"]) if use_resident is None \
        else bool(use_resident)
    if resident:
        return _pairnorm_resident(x, mode, scale,
                                  vmem_limit=params["resident_vmem"])

    # ---- two-pass streaming path --------------------------------------------
    tile2 = params["tile_bytes"]          # pass-2 tile (in + out double-buffered)
    tile1 = 2 * tile2                     # pass-1 tile (no large output block)
    vmem = params["stream_vmem"]
    cores = params["cores"] if stats_cores is None else int(stats_cores)

    pack_l = _pack_lanes(n, d)
    xs = x.reshape((n * d) // pack_l, pack_l) if pack_l else x
    l = xs.shape[1]

    # pass 1: per-lane column sums + per-lane sums of squares (f32 accumulate)
    colsum, sumsq = _stats(xs, tile_bytes=tile1, vmem_limit=vmem,
                           num_cores=cores, block_rows=block_rows)
    col_sum = colsum.reshape(pack_l // d, d).sum(axis=0) if pack_l else colsum
    mu = col_sum * (1.0 / n)                                   # (D,), f32

    # pass 2: elementwise normalization
    if mode in ("AVG", "PN"):
        if mode == "AVG":
            c = jnp.float32(1.0)
        else:
            # NOTE(numerics): uncentered identity (per-lane f32 partial sums);
            # the resident path computes the centered sum directly.
            mean_sq = sumsq * (1.0 / n) - jnp.sum(mu * mu)
            c = scale * lax.rsqrt(mean_sq + _EPS)
        mul_row = jnp.broadcast_to(c, (1, l)).astype(jnp.float32)
        sub_vec = (mu * c).reshape(1, d).astype(jnp.float32)
        sub_row = jnp.tile(sub_vec, (1, l // d)) if pack_l else sub_vec
        out = _apply_affine(xs, mul_row, sub_row, tile_bytes=tile2,
                            vmem_limit=vmem, block_rows=block_rows)
        return out.reshape(n, d) if pack_l else out

    # 'PN-SI' / 'PN-SCS'
    mu_vec = mu.reshape(1, d).astype(jnp.float32)
    mu_row = jnp.tile(mu_vec, (1, l // d)) if pack_l else mu_vec
    bd = None
    if pack_l:
        seg = jnp.arange(l, dtype=jnp.int32) // d
        bd = (seg[:, None] == seg[None, :]).astype(jnp.float32)  # (L, L) 0/1
    out = _apply_rownorm(xs, mu_row, mode=mode, scale=scale,
                         tile_bytes=tile2, vmem_limit=vmem,
                         block_diag=bd, block_rows=block_rows)
    return out.reshape(n, d) if pack_l else out


# -----------------------------------------------------------------------------
# Pure-JAX reference mirroring the PyTorch forward exactly.
# -----------------------------------------------------------------------------
def _pairnorm_ref(x, mode="PN", scale=1.0):
    if mode == "None":
        return x
    col_mean = x.mean(axis=0)
    if mode == "AVG":
        x = x - col_mean
    if mode == "PN":
        x = x - col_mean
        rownorm_mean = jnp.sqrt(1e-6 + (x ** 2).sum(axis=1).mean())
        x = scale * x / rownorm_mean
    if mode == "PN-SI":
        x = x - col_mean
        rownorm_ind = jnp.sqrt(1e-6 + (x ** 2).sum(axis=1, keepdims=True))
        x = scale * x / rownorm_ind
    if mode == "PN-SCS":
        rownorm_ind = jnp.sqrt(1e-6 + (x ** 2).sum(axis=1, keepdims=True))
        x = scale * x / rownorm_ind - col_mean
    return x


if __name__ == "__main__":
    key = jax.random.PRNGKey(0)

    def _check(got, ref, tag):
        assert jnp.allclose(got, ref, atol=1e-5, rtol=1e-5), tag

    # (num_nodes, num_features) = (128, 32): small graph -> fused resident path.
    N, D = 128, 32
    x = jax.random.normal(key, (N, D), dtype=jnp.float32)
    out = pairnorm(x, mode="PN", scale=1.0)
    jax.block_until_ready(out)

    # 1) fused resident path (auto dispatch), all modes.
    for mode in _MODES:
        got = jax.block_until_ready(pairnorm(x, mode=mode, scale=1.0))
        _check(got, _pairnorm_ref(x, mode=mode, scale=1.0), ("resident", mode))

    # 2) streaming path, lane-packed D=32 -> 128 lanes (forced off-resident).
    for mode in _MODES:
        got = jax.block_until_ready(
            pairnorm(x, mode=mode, scale=1.3, use_resident=False, block_rows=8))
        _check(got, _pairnorm_ref(x, mode=mode, scale=1.3), ("stream-pack", mode))

    # 3) streaming, lcm packing (D=48 -> 384 lanes), partial last tile, and the
    #    v7x-style 2-core stats split (correct, merely serial, on 1-core chips).
    x2 = jax.random.normal(jax.random.PRNGKey(1), (160, 48), dtype=jnp.float32)
    for mode in _MODES:
        got = jax.block_until_ready(
            pairnorm(x2, mode=mode, scale=0.7, use_resident=False,
                     block_rows=8, stats_cores=2))
        _check(got, _pairnorm_ref(x2, mode=mode, scale=0.7), ("stream-lcm", mode))

    # 4) streaming un-packable fallback (D=56 -> lcm=896 > cap) with an odd
    #    tile count so the clamped / padded stats grid is exercised.
    x3 = jax.random.normal(jax.random.PRNGKey(2), (120, 56), dtype=jnp.float32)
    for mode in _MODES:
        got = jax.block_until_ready(
            pairnorm(x3, mode=mode, scale=1.0, use_resident=False,
                     block_rows=48, stats_cores=2))
        _check(got, _pairnorm_ref(x3, mode=mode, scale=1.0), ("stream-raw", mode))

    print("KERNEL_OK")
</pallas_src>

<mosaic_0001>
module attributes {stable_mosaic.version = 11 : i64} {
  func.func @_resident_kernel(%arg0: i32, %arg1: memref<128x32xf32, #tpu.memory_space<vmem>>, %arg2: memref<128x32xf32, #tpu.memory_space<vmem>>) attributes {dimension_semantics = [#tpu.dimension_semantics<arbitrary>], iteration_bounds = array<i64: 1>, scalar_prefetch = 0 : i64, scratch_operands = 0 : i64, tpu.core_type = #tpu.core_type<tc>, window_params = [{pipeline_mode = #tpu.pipeline_mode<synchronous>, transform_indices = @transform_0, window_bounds = array<i64: 128, 32>}, {pipeline_mode = #tpu.pipeline_mode<synchronous>, transform_indices = @transform_1, window_bounds = array<i64: 128, 32>}]} {
    %c0 = arith.constant 0 : index
    %c0_0 = arith.constant 0 : index
    %0 = vector.load %arg1[%c0, %c0_0] : memref<128x32xf32, #tpu.memory_space<vmem>>, vector<128x32xf32>
    %cst = arith.constant dense<0.000000e+00> : vector<32xf32>
    %1 = vector.multi_reduction <add>, %0, %cst [0] : vector<128x32xf32> to vector<32xf32>
    %2 = vector.shape_cast %1 : vector<32xf32> to vector<1x32xf32>
    %cst_1 = arith.constant 7.812500e-03 : f32
    %3 = vector.broadcast %cst_1 : f32 to vector<1x32xf32>
    %4 = arith.mulf %2, %3 : vector<1x32xf32>
    %5 = vector.broadcast %4 : vector<1x32xf32> to vector<128x32xf32>
    %6 = arith.subf %0, %5 : vector<128x32xf32>
    %7 = arith.mulf %6, %6 : vector<128x32xf32>
    %8 = vector.shape_cast %7 : vector<128x32xf32> to vector<1x128x32xf32>
    %cst_2 = arith.constant dense<0.000000e+00> : vector<1xf32>
    %9 = vector.multi_reduction <add>, %8, %cst_2 [1, 2] : vector<1x128x32xf32> to vector<1xf32>
    %10 = vector.shape_cast %9 : vector<1xf32> to vector<1x1x1xf32>
    %11 = vector.extract %10[0, 0, 0] : f32 from vector<1x1x1xf32>
    %cst_3 = arith.constant 7.812500e-03 : f32
    %12 = arith.mulf %11, %cst_3 : f32
    %cst_4 = arith.constant 9.99999997E-7 : f32
    %13 = arith.addf %12, %cst_4 : f32
    %14 = math.rsqrt %13 : f32
    %cst_5 = arith.constant 1.000000e+00 : f32
    %15 = arith.mulf %cst_5, %14 : f32
    %16 = vector.broadcast %15 : f32 to vector<128x32xf32>
    %17 = arith.mulf %6, %16 : vector<128x32xf32>
    %c0_6 = arith.constant 0 : index
    %c0_7 = arith.constant 0 : index
    %18 = vector.load %arg2[%c0_6, %c0_7] : memref<128x32xf32, #tpu.memory_space<vmem>>, vector<128x32xf32>
    tpu.vector_store %arg2[%c0_6, %c0_7], %17 {strides = array<i32>} : memref<128x32xf32, #tpu.memory_space<vmem>>, vector<128x32xf32>,
    return
  }
  func.func @transform_0(%arg0: i32) -> (i32, i32) {
    %c0_i32 = arith.constant 0 : i32
    %c0_i32_0 = arith.constant 0 : i32
    %c0_i32_1 = arith.constant 0 : i32
    return %c0_i32, %c0_i32_0 : i32, i32
  }
  func.func @transform_1(%arg0: i32) -> (i32, i32) {
    %c0_i32 = arith.constant 0 : i32
    %c0_i32_0 = arith.constant 0 : i32
    %c0_i32_1 = arith.constant 0 : i32
    return %c0_i32, %c0_i32_0 : i32, i32
  }
}

</mosaic_0001>

<llo_original>
// kernel: tpu_custom_call.1
$region0: #{tpu_custom_call.1}
  #allocation0 [shape = 'u32[]', space=smem, size = 0x4, offset = 0x4, fixed_abs, tag = 'smem constant byte address 0x4 - core index']
  #allocation1 [shape = 'u32[72,128]{1,0:T(1,128)}', space=vmem, size = 0x9000, scoped, tag = 'internal scratch']
  %s0 = inlined_call_operand.vmem [shape: f32[128,32], index: 0, kind: input, shape index: {}]
  %s1 = inlined_call_operand.vmem [shape: f32[128,32], index: 1, kind: output, shape index: {}]
  %s2 = sld [smem:[#allocation0]]
  $region14: #{tpu_custom_call.1} parent=0
    _
  %s4 = ssub.s32 1, %s2
  %s5 = scalar_select 0, %s4, %s2
  // Predicated region
  $region2: #{tpu_custom_call.1} parent=0 // pred_check
    _
  $region3: #{tpu_custom_call.1} parent=0 // pred_check_branch
    %7 = sbr.rel (0) target = $region5
  $region4: #{tpu_custom_call.1} parent=0 // pred_region
    _
  $region5: #{tpu_custom_call.1} parent=0 // pred_fallthru
    _
  %v8 = vld [vmem:[%s0] sm:$0xff]
  %v9 = vld [vmem:[%s0 + $0x8] sm:$0xff]
  %v10 = vld [vmem:[%s0 + $0x10] sm:$0xff]
  %v11 = vld [vmem:[%s0 + $0x18] sm:$0xff]
  %v12 = vld [vmem:[%s0 + $0x20] sm:$0xff]
  %v13 = vld [vmem:[%s0 + $0x28] sm:$0xff]
  %v14 = vld [vmem:[%s0 + $0x30] sm:$0xff]
  %v15 = vld [vmem:[%s0 + $0x38] sm:$0xff]
  %v16 = vld [vmem:[%s0 + $0x40] sm:$0xff]
  %v17 = vld [vmem:[%s0 + $0x48] sm:$0xff]
  %v18 = vld [vmem:[%s0 + $0x50] sm:$0xff]
  %v19 = vld [vmem:[%s0 + $0x58] sm:$0xff]
  %v20 = vld [vmem:[%s0 + $0x60] sm:$0xff]
  %v21 = vld [vmem:[%s0 + $0x68] sm:$0xff]
  %v22 = vld [vmem:[%s0 + $0x70] sm:$0xff]
  %v23 = vld [vmem:[%s0 + $0x78] sm:$0xff]
  %vm24 = vcmask 261120
  %v25 = vsel %vm24, %v8, 0.0
  %v26 = vsel %vm24, %v9, 0.0
  %v27 = vadd.f32 %v25, %v26
  %v28 = vsel %vm24, %v10, 0.0
  %v29 = vadd.f32 %v27, %v28
  %v30 = vsel %vm24, %v11, 0.0
  %v31 = vadd.f32 %v29, %v30
  %v32 = vsel %vm24, %v12, 0.0
  %v33 = vadd.f32 %v31, %v32
  %v34 = vsel %vm24, %v13, 0.0
  %v35 = vadd.f32 %v33, %v34
  %v36 = vsel %vm24, %v14, 0.0
  %v37 = vadd.f32 %v35, %v36
  %v38 = vsel %vm24, %v15, 0.0
  %v39 = vadd.f32 %v37, %v38
  %v40 = vsel %vm24, %v16, 0.0
  %v41 = vadd.f32 %v39, %v40
  %v42 = vsel %vm24, %v17, 0.0
  %v43 = vadd.f32 %v41, %v42
  %v44 = vsel %vm24, %v18, 0.0
  %v45 = vadd.f32 %v43, %v44
  %v46 = vsel %vm24, %v19, 0.0
  %v47 = vadd.f32 %v45, %v46
  %v48 = vsel %vm24, %v20, 0.0
  %v49 = vadd.f32 %v47, %v48
  %v50 = vsel %vm24, %v21, 0.0
  %v51 = vadd.f32 %v49, %v50
  %v52 = vsel %vm24, %v22, 0.0
  %v53 = vadd.f32 %v51, %v52
  %v54 = vsel %vm24, %v23, 0.0
  %v55 = vadd.f32 %v53, %v54
  %v56 = vrot.slane %v55, 4
  %v57 = vadd.f32 %v55, %v56
  %v58 = vrot.slane %v57, 2
  %v59 = vadd.f32 %v57, %v58
  %v60 = vrot.slane %v59, 1
  %v61 = vadd.f32 %v59, %v60
  %v62 = vmul.f32 %v61, 0.0078125
  %v63 = vsub.f32 %v8, %v62
  %v64 = vsub.f32 %v9, %v62
  %v65 = vsub.f32 %v10, %v62
  %v66 = vsub.f32 %v11, %v62
  %v67 = vsub.f32 %v12, %v62
  %v68 = vsub.f32 %v13, %v62
  %v69 = vsub.f32 %v14, %v62
  %v70 = vsub.f32 %v15, %v62
  %v71 = vsub.f32 %v16, %v62
  %v72 = vsub.f32 %v17, %v62
  %v73 = vsub.f32 %v18, %v62
  %v74 = vsub.f32 %v19, %v62
  %v75 = vsub.f32 %v20, %v62
  %v76 = vsub.f32 %v21, %v62
  %v77 = vsub.f32 %v22, %v62
  %v78 = vsub.f32 %v23, %v62
  %v79 = vmul.f32 %v63, %v63
  %v80 = vmul.f32 %v64, %v64
  %v81 = vmul.f32 %v65, %v65
  %v82 = vmul.f32 %v66, %v66
  %v83 = vmul.f32 %v67, %v67
  %v84 = vmul.f32 %v68, %v68
  %v85 = vmul.f32 %v69, %v69
  %v86 = vmul.f32 %v70, %v70
  %v87 = vmul.f32 %v71, %v71
  %v88 = vmul.f32 %v72, %v72
  %v89 = vmul.f32 %v73, %v73
  %v90 = vmul.f32 %v74, %v74
  %v91 = vmul.f32 %v75, %v75
  %v92 = vmul.f32 %v76, %v76
  %v93 = vmul.f32 %v77, %v77
  %v94 = vmul.f32 %v78, %v78
  %v95 = vsel %vm24, %v79, 0.0
  %v96 = vsel %vm24, %v80, 0.0
  %v97 = vadd.f32 %v95, %v96
  %v98 = vsel %vm24, %v81, 0.0
  %v99 = vadd.f32 %v97, %v98
  %v100 = vsel %vm24, %v82, 0.0
  %v101 = vadd.f32 %v99, %v100
  %v102 = vsel %vm24, %v83, 0.0
  %v103 = vadd.f32 %v101, %v102
  %v104 = vsel %vm24, %v84, 0.0
  %v105 = vadd.f32 %v103, %v104
  %v106 = vsel %vm24, %v85, 0.0
  %v107 = vadd.f32 %v105, %v106
  %v108 = vsel %vm24, %v86, 0.0
  %v109 = vadd.f32 %v107, %v108
  %v110 = vsel %vm24, %v87, 0.0
  %v111 = vadd.f32 %v109, %v110
  %v112 = vsel %vm24, %v88, 0.0
  %v113 = vadd.f32 %v111, %v112
  %v114 = vsel %vm24, %v89, 0.0
  %v115 = vadd.f32 %v113, %v114
  %v116 = vsel %vm24, %v90, 0.0
  %v117 = vadd.f32 %v115, %v116
  %v118 = vsel %vm24, %v91, 0.0
  %v119 = vadd.f32 %v117, %v118
  %v120 = vsel %vm24, %v92, 0.0
  %v121 = vadd.f32 %v119, %v120
  %v122 = vsel %vm24, %v93, 0.0
  %v123 = vadd.f32 %v121, %v122
  %v124 = vsel %vm24, %v94, 0.0
  %v125 = vadd.f32 %v123, %v124
  %126 = vadd.xlane.f32.xlu0 %v125
  %v127 = vpop.xlane.xlu0 %126
  %v128 = vrot.slane %v127, 4
  %v129 = vadd.f32 %v127, %v128
  %v130 = vrot.slane %v129, 2
  %v131 = vadd.f32 %v129, %v130
  %v132 = vrot.slane %v131, 1
  %v133 = vadd.f32 %v131, %v132
  %s134 = vtos %v133
  %s135 = smul.f32 %s134, 0.0078125
  %s136 = sadd.f32 %s135, 1e-06
  %v137 = vstv %s136
  %v138 = vrsqrt.pop %v137
  %v139 = vmul.f32 %v138, %v137
  %v140 = vmul.f32 %v139, %v138
  %v141 = vmul.f32 0.5, %v140
  %v142 = vsub.f32 1.5, %v141
  %v143 = vmul.f32 %v138, %v142
  %vm144 = vweird.f32 %v137
  %vm145 = vweird.f32 %v138
  %vm146 = vmor %vm144, %vm145
  %v147 = vsel %vm146, %v138, %v143
  %s148 = vtos %v147
  %v149 = vstv %s148
  %v150 = vmul.f32 %v63, %v149
  %v151 = vmul.f32 %v64, %v149
  %v152 = vmul.f32 %v65, %v149
  %v153 = vmul.f32 %v66, %v149
  %v154 = vmul.f32 %v67, %v149
  %v155 = vmul.f32 %v68, %v149
  %v156 = vmul.f32 %v69, %v149
  %v157 = vmul.f32 %v70, %v149
  %v158 = vmul.f32 %v71, %v149
  %v159 = vmul.f32 %v72, %v149
  %v160 = vmul.f32 %v73, %v149
  %v161 = vmul.f32 %v74, %v149
  %v162 = vmul.f32 %v75, %v149
  %v163 = vmul.f32 %v76, %v149
  %v164 = vmul.f32 %v77, %v149
  %v165 = vmul.f32 %v78, %v149
  %166 = vst.msk [vmem:[%s1] sm:$0xff] %vm24, %v150
  %167 = vst.msk [vmem:[%s1 + $0x8] sm:$0xff] %vm24, %v151
  %168 = vst.msk [vmem:[%s1 + $0x10] sm:$0xff] %vm24, %v152
  %169 = vst.msk [vmem:[%s1 + $0x18] sm:$0xff] %vm24, %v153
  %170 = vst.msk [vmem:[%s1 + $0x20] sm:$0xff] %vm24, %v154
  %171 = vst.msk [vmem:[%s1 + $0x28] sm:$0xff] %vm24, %v155
  %172 = vst.msk [vmem:[%s1 + $0x30] sm:$0xff] %vm24, %v156
  %173 = vst.msk [vmem:[%s1 + $0x38] sm:$0xff] %vm24, %v157
  %174 = vst.msk [vmem:[%s1 + $0x40] sm:$0xff] %vm24, %v158
  %175 = vst.msk [vmem:[%s1 + $0x48] sm:$0xff] %vm24, %v159
  %176 = vst.msk [vmem:[%s1 + $0x50] sm:$0xff] %vm24, %v160
  %177 = vst.msk [vmem:[%s1 + $0x58] sm:$0xff] %vm24, %v161
  %178 = vst.msk [vmem:[%s1 + $0x60] sm:$0xff] %vm24, %v162
  %179 = vst.msk [vmem:[%s1 + $0x68] sm:$0xff] %vm24, %v163
  %180 = vst.msk [vmem:[%s1 + $0x70] sm:$0xff] %vm24, %v164
  %181 = vst.msk [vmem:[%s1 + $0x78] sm:$0xff] %vm24, %v165
  // Predicated region
  $region6: #{tpu_custom_call.1} parent=0 // pred_check
    _
  $region7: #{tpu_custom_call.1} parent=0 // pred_check_branch
    %183 = sbr.rel (0) target = $region9
  $region8: #{tpu_custom_call.1} parent=0 // pred_region
    _
  $region9: #{tpu_custom_call.1} parent=0 // pred_fallthru
    _
  // Predicated region
  $region10: #{tpu_custom_call.1} parent=0 // pred_check
    _
  $region11: #{tpu_custom_call.1} parent=0 // pred_check_branch
    %185 = sbr.rel (0) target = $region13
  $region12: #{tpu_custom_call.1} parent=0 // pred_region
    _
  $region13: #{tpu_custom_call.1} parent=0 // pred_fallthru
    _

</llo_original>
